<compile_context>
chip_gen: v6e
topology: v6e:2x2x1
jax: 0.10.0
libtpu: 0.0.40
codegen_flags: <defaults>
</compile_context>

<pallas_src>
import math
import functools

import jax
import jax.numpy as jnp
from jax.experimental import pallas as pl
from jax.experimental.pallas import tpu as pltpu


# ----------------------------------------------------------------------------
# Parameter / buffer setup (plain JAX glue — mirrors nn.Module.__init__)
# ----------------------------------------------------------------------------
def make_pe_buffer(d_model: int, max_len: int = 5000) -> jnp.ndarray:
    """Builds the (max_len, 1, d_model) sinusoidal positional-encoding buffer."""
    position = jnp.arange(max_len, dtype=jnp.float32)[:, None]           # (L, 1)
    div_term = jnp.exp(
        jnp.arange(0, d_model, 2, dtype=jnp.float32)
        * (-math.log(10000.0) / d_model)
    )                                                                     # (D/2,)
    pe = jnp.zeros((max_len, 1, d_model), dtype=jnp.float32)
    pe = pe.at[:, 0, 0::2].set(jnp.sin(position * div_term))
    pe = pe.at[:, 0, 1::2].set(jnp.cos(position * div_term))
    return pe


# ----------------------------------------------------------------------------
# Tile-size heuristic
# ----------------------------------------------------------------------------
def _round_up(n: int, m: int) -> int:
    return -(-n // m) * m


def _pick_seq_tile(S: int, B: int, D: int, itemsize: int,
                   vmem_budget_bytes: int = 24 * 1024 * 1024) -> int:
    """Sequence rows per block so the double-buffered working set is ~24 MiB.

    Budgets x-in + out blocks (each (ts, B, D) with the (B, D) minor dims padded
    to (8, 128)) plus the dense (ts, D) pe block, all double-buffered.  ~24 MiB
    stays under the 32 MiB scoped VMEM limit on every chip (v7x included) while
    giving multi-MiB blocks that amortize per-grid-step overhead even at
    v7x-class HBM bandwidth.
    """
    pad_b = _round_up(B, 8)
    pad_d = _round_up(D, 128)
    per_row = 2 * (2 * pad_b * pad_d + pad_d) * itemsize      # 2x = double buffer
    ts = min(S, max(1, vmem_budget_bytes // per_row))
    if ts >= S:
        return S            # single block; pe block shape == full pe slice dims
    # Multi-block: keep ts a multiple of 8 so the 2-D pe block's sublane dim
    # satisfies the (8, 128) block-shape constraint.
    if ts >= 8:
        ts -= ts % 8
    else:
        ts = min(8, S)      # pathological huge-(B*D)-row fallback
    # Prefer an 8-aligned tile that divides S (no masked partial tail block),
    # as long as it is at least half the budgeted tile.
    best = 0
    for cand in range(8, ts + 1, 8):
        if S % cand == 0:
            best = cand
    if best >= max(8, ts // 2):
        ts = best
    return max(1, ts)


# ----------------------------------------------------------------------------
# Pallas kernel: broadcast add of pe + (optional inverted) dropout
# ----------------------------------------------------------------------------
def _pe_dropout_kernel(seed_ref, x_ref, pe_ref, o_ref, *,
                       keep_prob: float, tile_rows: int, batch: int, dmodel: int):
    # x_ref: (ts, B, D) tile; pe_ref: (ts, D) tile (dense 2-D, pre-cast to x dtype).
    # Math stays in the native input dtype: bf16 add/select keeps VPU slot
    # pressure low on v6e/v7x; f32 inputs keep the f32 path (v5e-friendly).
    y = x_ref[...] + pe_ref[...][:, None, :]

    if keep_prob < 1.0:
        # Inverted dropout (same scaling convention as torch.nn.Dropout).
        # Counter-based RNG: splitmix32-style hash of the global element index
        # mixed with the per-call seed.  Portable (lowers on Mosaic and in
        # interpret mode) and gives decorrelated masks across seeds / blocks.
        # TODO(synk): cannot bitwise-match torch's dropout RNG stream; on real
        # TPU pltpu.prng_random_bits would halve the per-element VALU cost.
        shape = y.shape
        row = jax.lax.broadcasted_iota(jnp.int32, shape, 0).astype(jnp.uint32)
        bat = jax.lax.broadcasted_iota(jnp.int32, shape, 1).astype(jnp.uint32)
        col = jax.lax.broadcasted_iota(jnp.int32, shape, 2).astype(jnp.uint32)
        base = (pl.program_id(0) * tile_rows).astype(jnp.uint32)
        gid = ((row + base) * jnp.uint32(batch * dmodel)
               + bat * jnp.uint32(dmodel) + col)
        seed_u = seed_ref[0].astype(jnp.uint32)          # non-negative by wrapper
        h = gid ^ (seed_u * jnp.uint32(0x9E3779B9))
        h = h ^ (h >> 16)
        h = h * jnp.uint32(0x7FEB352D)
        h = h ^ (h >> 15)
        h = h * jnp.uint32(0x846CA68B)
        h = h ^ (h >> 16)
        # Top 23 bits -> int32 so the threshold compare stays a plain signed cmp.
        r = (h >> 9).astype(jnp.int32)
        thresh = jnp.int32(min(int(round(keep_prob * (1 << 23))), 1 << 23))
        keep = r < thresh
        scale = jnp.asarray(1.0 / keep_prob, dtype=y.dtype)
        y = jnp.where(keep, y * scale, jnp.zeros_like(y))

    o_ref[...] = y.astype(o_ref.dtype)


def positional_encoding_forward(
    x: jnp.ndarray,
    pe: jnp.ndarray,
    *,
    dropout_p: float = 0.1,
    training: bool = False,
    seed=0,
    seq_tile: int | None = None,
    donate_x: bool = False,
) -> jnp.ndarray:
    """Forward pass: x + pe[:S] (broadcast over batch), then dropout(p) if training."""
    S, B, D = x.shape
    assert pe.shape[0] >= S and pe.shape[-1] == D, "pe buffer too small for input"

    itemsize = jnp.dtype(x.dtype).itemsize
    ts = seq_tile if seq_tile is not None else _pick_seq_tile(S, B, D, itemsize)
    ts = max(1, min(int(ts), S))
    grid = (pl.cdiv(S, ts),)          # ragged tail (if any) is masked by Pallas

    # Dense 2-D pe slab in the input dtype: no 8x sublane padding of a size-1
    # dim in VMEM, and half the pe HBM traffic for bf16 inputs.  Slicing to S
    # rows keeps the grid-1 / small-S block shape equal to the full array dims.
    pe2d = pe.reshape(pe.shape[0], D)[:S].astype(x.dtype)

    keep_prob = 1.0 - float(dropout_p) if training else 1.0
    kernel = functools.partial(_pe_dropout_kernel, keep_prob=keep_prob,
                               tile_rows=ts, batch=B, dmodel=D)

    # Non-negative int32 seed scalar in SMEM; mixed with the element counter
    # in-kernel so distinct seeds give decorrelated masks across training steps.
    seed_arr = (jnp.asarray(seed, dtype=jnp.int32)
                & jnp.int32(0x7FFFFFFF)).reshape(1)

    return pl.pallas_call(
        kernel,
        out_shape=jax.ShapeDtypeStruct((S, B, D), x.dtype),
        grid=grid,
        in_specs=[
            pl.BlockSpec(memory_space=pltpu.MemorySpace.SMEM),   # seed scalar
            pl.BlockSpec((ts, B, D), lambda i: (i, 0, 0)),       # x tile
            pl.BlockSpec((ts, D), lambda i: (i, 0)),             # pe tile (2-D dense)
        ],
        out_specs=pl.BlockSpec((ts, B, D), lambda i: (i, 0, 0)),
        # Alias x -> out (free footprint / copy win) when the caller no longer
        # needs x.
        input_output_aliases=({1: 0} if donate_x else {}),
        compiler_params=pltpu.CompilerParams(
            dimension_semantics=("parallel",),    # shard seq tiles across v7x's 2 TCs
            vmem_limit_bytes=32 * 1024 * 1024,
        ),
    )(seed_arr, x, pe2d)


# ----------------------------------------------------------------------------
# Demo / correctness check
# ----------------------------------------------------------------------------
if __name__ == "__main__":
    d_model = 32
    max_len = 64
    batch = 2

    pe = make_pe_buffer(d_model, max_len)

    # --- eval mode (dropout is identity), single tile ---------------------
    seq_len = 8
    x = jax.random.normal(jax.random.PRNGKey(0), (seq_len, batch, d_model),
                          dtype=jnp.float32)
    out = jax.block_until_ready(
        positional_encoding_forward(x, pe, dropout_p=0.1, training=False))
    ref = x + pe[:seq_len]
    assert out.shape == (seq_len, batch, d_model)
    assert jnp.allclose(out, ref, atol=1e-6, rtol=1e-6)

    # --- eval mode, multi-step grid with a ragged tail (S=20, tile=8) -----
    seq_len2 = 20
    x2 = jax.random.normal(jax.random.PRNGKey(1), (seq_len2, batch, d_model),
                           dtype=jnp.float32)
    out2 = jax.block_until_ready(
        positional_encoding_forward(x2, pe, dropout_p=0.1, training=False,
                                    seq_tile=8))
    ref2 = x2 + pe[:seq_len2]
    assert jnp.allclose(out2, ref2, atol=1e-6, rtol=1e-6)

    # --- eval mode, bf16 input (native-dtype math path) --------------------
    xb = x.astype(jnp.bfloat16)
    outb = jax.block_until_ready(
        positional_encoding_forward(xb, pe, dropout_p=0.1, training=False))
    refb = xb + pe[:seq_len].astype(jnp.bfloat16)
    assert outb.dtype == jnp.bfloat16
    assert jnp.allclose(outb.astype(jnp.float32), refb.astype(jnp.float32),
                        atol=2e-2, rtol=2e-2)

    # --- training mode: inverted dropout via hashed-counter mask ----------
    p = 0.1
    keep_prob = 1.0 - p
    out_tr = jax.block_until_ready(
        positional_encoding_forward(x, pe, dropout_p=p, training=True, seed=123))
    kept = out_tr != 0.0
    err = jnp.where(kept, jnp.abs(out_tr - ref / keep_prob), 0.0)
    assert float(jnp.max(err)) < 1e-4
    drop_frac = 1.0 - float(jnp.mean(kept.astype(jnp.float32)))
    assert 0.0 < drop_frac <= 0.35, f"implausible drop fraction {drop_frac}"

    # --- training mode across multiple grid blocks (S=20, tile=8) ---------
    out2_tr = jax.block_until_ready(
        positional_encoding_forward(x2, pe, dropout_p=p, training=True,
                                    seed=7, seq_tile=8))
    kept2 = out2_tr != 0.0
    err2 = jnp.where(kept2, jnp.abs(out2_tr - ref2 / keep_prob), 0.0)
    assert float(jnp.max(err2)) < 1e-4
    drop_frac2 = 1.0 - float(jnp.mean(kept2.astype(jnp.float32)))
    assert 0.0 < drop_frac2 <= 0.35, f"implausible drop fraction {drop_frac2}"

    # different seeds must give different masks
    out2_tr_b = jax.block_until_ready(
        positional_encoding_forward(x2, pe, dropout_p=p, training=True,
                                    seed=8, seq_tile=8))
    assert bool(jnp.any((out2_tr_b != 0.0) != kept2))

    print("KERNEL_OK")
</pallas_src>

<mosaic_0001>
module attributes {stable_mosaic.version = 11 : i64} {
  func.func @_pe_dropout_kernel(%arg0: i32, %arg1: memref<1xi32, #tpu.memory_space<smem>>, %arg2: memref<8x2x32xf32, #tpu.memory_space<vmem>>, %arg3: memref<8x32xf32, #tpu.memory_space<vmem>>, %arg4: memref<8x2x32xf32, #tpu.memory_space<vmem>>) attributes {dimension_semantics = [#tpu.dimension_semantics<parallel>], iteration_bounds = array<i64: 1>, scalar_prefetch = 0 : i64, scratch_operands = 0 : i64, tpu.core_type = #tpu.core_type<tc>, window_params = [{transform_indices = @transform_0, window_bounds = array<i64: 1>}, {transform_indices = @transform_1, window_bounds = array<i64: 8, 2, 32>}, {transform_indices = @transform_2, window_bounds = array<i64: 8, 32>}, {transform_indices = @transform_3, window_bounds = array<i64: 8, 2, 32>}]} {
    %c0 = arith.constant 0 : index
    %c0_0 = arith.constant 0 : index
    %c0_1 = arith.constant 0 : index
    %0 = vector.load %arg2[%c0, %c0_0, %c0_1] : memref<8x2x32xf32, #tpu.memory_space<vmem>>, vector<8x2x32xf32>
    %c0_2 = arith.constant 0 : index
    %c0_3 = arith.constant 0 : index
    %1 = vector.load %arg3[%c0_2, %c0_3] : memref<8x32xf32, #tpu.memory_space<vmem>>, vector<8x32xf32>
    %2 = vector.shape_cast %1 : vector<8x32xf32> to vector<8x1x32xf32>
    %3 = vector.broadcast %2 : vector<8x1x32xf32> to vector<8x2x32xf32>
    %4 = arith.addf %0, %3 : vector<8x2x32xf32>
    %c0_4 = arith.constant 0 : index
    %c0_5 = arith.constant 0 : index
    %c0_6 = arith.constant 0 : index
    %5 = vector.load %arg4[%c0_4, %c0_5, %c0_6] : memref<8x2x32xf32, #tpu.memory_space<vmem>>, vector<8x2x32xf32>
    tpu.vector_store %arg4[%c0_4, %c0_5, %c0_6], %4 {strides = array<i32>} : memref<8x2x32xf32, #tpu.memory_space<vmem>>, vector<8x2x32xf32>,
    return
  }
  func.func @transform_0(%arg0: i32) -> i32 {
    %c0_i32 = arith.constant 0 : i32
    %c0_i32_0 = arith.constant 0 : i32
    return %c0_i32 : i32
  }
  func.func @transform_1(%arg0: i32) -> (i32, i32, i32) {
    %c0_i32 = arith.constant 0 : i32
    %c0_i32_0 = arith.constant 0 : i32
    %c0_i32_1 = arith.constant 0 : i32
    return %arg0, %c0_i32, %c0_i32_0 : i32, i32, i32
  }
  func.func @transform_2(%arg0: i32) -> (i32, i32) {
    %c0_i32 = arith.constant 0 : i32
    %c0_i32_0 = arith.constant 0 : i32
    return %arg0, %c0_i32 : i32, i32
  }
  func.func @transform_3(%arg0: i32) -> (i32, i32, i32) {
    %c0_i32 = arith.constant 0 : i32
    %c0_i32_0 = arith.constant 0 : i32
    %c0_i32_1 = arith.constant 0 : i32
    return %arg0, %c0_i32, %c0_i32_0 : i32, i32, i32
  }
}

</mosaic_0001>

<llo_original>
// kernel: tpu_custom_call.1
$region0: #{tpu_custom_call.1}
  #allocation0 [shape = 'u32[]', space=smem, size = 0x4, offset = 0x4, fixed_abs, tag = 'smem constant byte address 0x4 - core index']
  #allocation1 [shape = 'u32[144,128]{1,0:T(1,128)}', space=vmem, size = 0x12000, scoped, tag = 'internal scratch']
  #allocation2 [shape = 's32[1]{0:T(128)S(6)}', space=smem, size = 0x200, scoped, tag = 'scoped memory for tpu_custom_call.1']
  %s0 = inlined_call_operand.<no memory space> [shape: s32[1], index: 0, kind: input, shape index: {}]
  %s1 = inlined_call_operand.hbm [shape: f32[8,2,32], index: 1, kind: input, shape index: {}]
  %s2 = inlined_call_operand.hbm [shape: f32[8,32], index: 2, kind: input, shape index: {}]
  %s3 = inlined_call_operand.hbm [shape: f32[8,2,32], index: 3, kind: output, shape index: {}]
  %s4 = sld [smem:[#allocation0]]
  $region30: #{tpu_custom_call.1} parent=0
    _
  %s6 = ssub.s32 1, %s4
  %s7 = scalar_select 0, %s6, %s4
  %8 = sst [smem:[#allocation2]] %s0
  $region1: #{tpu_custom_call.1} parent=0
    #allocation3 [shape = 'u8[8192]{0}', space=vmem, size = 0x2000, scoped, tag = 'input window, operand 1, single buffered']
    #allocation4 [shape = 's32[1]{0}', space=sflag, size = 0x4, scoped, tag = 'scoped memory for tpu_custom_call.1']
    #allocation5 [shape = 's32[1]{0}', space=sflag, size = 0x4, scoped, tag = 'scoped memory for tpu_custom_call.1']
    #allocation6 [shape = 'u8[4096]{0}', space=vmem, size = 0x1000, scoped, tag = 'input window, operand 2, single buffered']
    #allocation7 [shape = 's32[1]{0}', space=sflag, size = 0x4, scoped, tag = 'scoped memory for tpu_custom_call.1']
    #allocation8 [shape = 'u8[8192]{0}', space=vmem, size = 0x2000, scoped, tag = 'output window, operand 0, single buffered']
    %9 = vsyncpa [#allocation4], 0
    %10 = vsyncpa [#allocation7], 0
    %11 = vsyncpa [#allocation5], 0
    // Predicated region
    $region2: #{tpu_custom_call.1} parent=1 // pred_check
      _
    $region3: #{tpu_custom_call.1} parent=1 // pred_check_branch
      %13 = sbr.rel (0) target = $region5
    $region4: #{tpu_custom_call.1} parent=1 // pred_region
      _
    $region5: #{tpu_custom_call.1} parent=1 // pred_fallthru
      _
    // Predicated region
    $region6: #{tpu_custom_call.1} parent=1 // pred_check
      _
    $region7: #{tpu_custom_call.1} parent=1 // pred_check_branch
      %15 = sbr.rel (0) target = $region9
    $region8: #{tpu_custom_call.1} parent=1 // pred_region
      %s17 = ssub.s32 256, 256
      %18 = vsyncadd [#allocation4], %s17
      %s19 = sshll.u32 [#allocation3], 4
      %s20 = int_to_ptr.vmem [resolvable:$true] %s19
      %25 = dma.hbm_to_vmem [thread:$0]  %s1, 256, %s20, [#allocation4], 32, 32, 2
    $region9: #{tpu_custom_call.1} parent=1 // pred_fallthru
      _
    // Predicated region
    $region10: #{tpu_custom_call.1} parent=1 // pred_check
      _
    $region11: #{tpu_custom_call.1} parent=1 // pred_check_branch
      %27 = sbr.rel (0) target = $region13
    $region12: #{tpu_custom_call.1} parent=1 // pred_region
      %s29 = ssub.s32 128, 128
      %30 = vsyncadd [#allocation7], %s29
      %s32 = sshll.u32 [#allocation6], 4
      %s33 = int_to_ptr.vmem [resolvable:$true] %s32
      %35 = dma.hbm_to_vmem [thread:$0]  %s2, 128, %s33, [#allocation7]
    $region13: #{tpu_custom_call.1} parent=1 // pred_fallthru
      _
    // Predicated region
    $region14: #{tpu_custom_call.1} parent=1 // pred_check
      _
    $region15: #{tpu_custom_call.1} parent=1 // pred_check_branch
      %37 = sbr.rel (0) target = $region17
    $region16: #{tpu_custom_call.1} parent=1 // pred_region
      %38 = dma.done [#allocation4], 256
    $region17: #{tpu_custom_call.1} parent=1 // pred_fallthru
      _
    // Predicated region
    $region18: #{tpu_custom_call.1} parent=1 // pred_check
      _
    $region19: #{tpu_custom_call.1} parent=1 // pred_check_branch
      %40 = sbr.rel (0) target = $region21
    $region20: #{tpu_custom_call.1} parent=1 // pred_region
      %41 = dma.done [#allocation7], 128
    $region21: #{tpu_custom_call.1} parent=1 // pred_fallthru
      _
    %v42 = vld [vmem:[#allocation3] sm:$0x3]
    %v43 = vld [vmem:[#allocation3 + $0x2] sm:$0x3]
    %v44 = vld [vmem:[#allocation3 + $0x4] sm:$0x3]
    %v45 = vld [vmem:[#allocation3 + $0x6] sm:$0x3]
    %v46 = vld [vmem:[#allocation3 + $0x8] sm:$0x3]
    %v47 = vld [vmem:[#allocation3 + $0xa] sm:$0x3]
    %v48 = vld [vmem:[#allocation3 + $0xc] sm:$0x3]
    %v49 = vld [vmem:[#allocation3 + $0xe] sm:$0x3]
    %v50 = vld [vmem:[#allocation6] sm:$0xff]
    %v52 = vcombine.high %v50, %v50
    %v54 = vunpack.c.l.s4 1966171168
    %v55 = vunpack.c.0.s8 %v54
    %v56 = vlaneseq
    %v57 = vshrl.u32 %v56, 7
    %v58 = vsub.s32 %v55, %v57
    %v59 = vrot.slane %v50, %v58
    %v61 = vunpack.c.l.s4 1966171168
    %v62 = vunpack.c.0.s8 %v61
    %v63 = vlaneseq
    %v64 = vshrl.u32 %v63, 7
    %v65 = vsub.s32 %v62, %v64
    %v66 = vrot.slane %v52, %v65
    %v67 = vcombine.high %v59, %v59
    %v68 = vcombine.high %v66, %v66
    %v70 = vunpack.c.l.s4 1966171168
    %v71 = vunpack.c.0.s8 %v70
    %v72 = vlaneseq
    %v73 = vshrl.u32 %v72, 7
    %v74 = vsub.s32 %v71, %v73
    %v75 = vrot.slane %v59, %v74
    %v77 = vunpack.c.l.s4 1966171168
    %v78 = vunpack.c.0.s8 %v77
    %v79 = vlaneseq
    %v80 = vshrl.u32 %v79, 7
    %v81 = vsub.s32 %v78, %v80
    %v82 = vrot.slane %v66, %v81
    %v84 = vunpack.c.l.s4 1966171168
    %v85 = vunpack.c.0.s8 %v84
    %v86 = vlaneseq
    %v87 = vshrl.u32 %v86, 7
    %v88 = vsub.s32 %v85, %v87
    %v89 = vrot.slane %v67, %v88
    %v91 = vunpack.c.l.s4 1966171168
    %v92 = vunpack.c.0.s8 %v91
    %v93 = vlaneseq
    %v94 = vshrl.u32 %v93, 7
    %v95 = vsub.s32 %v92, %v94
    %v96 = vrot.slane %v68, %v95
    %v97 = vcombine.high %v75, %v75
    %v98 = vcombine.high %v82, %v82
    %v99 = vcombine.high %v89, %v89
    %v100 = vcombine.high %v96, %v96
    %v101 = vlaneseq
    %v102 = vshrl.u32 %v101, 7
    %v103 = vsub.s32 0, %v102
    %v104 = vrot.slane %v75, %v103
    %v105 = vlaneseq
    %v106 = vshrl.u32 %v105, 7
    %v107 = vsub.s32 0, %v106
    %v108 = vrot.slane %v89, %v107
    %v109 = vlaneseq
    %v110 = vshrl.u32 %v109, 7
    %v111 = vsub.s32 0, %v110
    %v112 = vrot.slane %v97, %v111
    %v113 = vlaneseq
    %v114 = vshrl.u32 %v113, 7
    %v115 = vsub.s32 0, %v114
    %v116 = vrot.slane %v99, %v115
    %v117 = vlaneseq
    %v118 = vshrl.u32 %v117, 7
    %v119 = vsub.s32 0, %v118
    %v120 = vrot.slane %v82, %v119
    %v121 = vlaneseq
    %v122 = vshrl.u32 %v121, 7
    %v123 = vsub.s32 0, %v122
    %v124 = vrot.slane %v96, %v123
    %v125 = vlaneseq
    %v126 = vshrl.u32 %v125, 7
    %v127 = vsub.s32 0, %v126
    %v128 = vrot.slane %v98, %v127
    %v129 = vlaneseq
    %v130 = vshrl.u32 %v129, 7
    %v131 = vsub.s32 0, %v130
    %v132 = vrot.slane %v100, %v131
    %v141 = vadd.f32 %v42, %v104
    %v142 = vadd.f32 %v43, %v108
    %v143 = vadd.f32 %v44, %v112
    %v144 = vadd.f32 %v45, %v116
    %v145 = vadd.f32 %v46, %v120
    %v146 = vadd.f32 %v47, %v124
    %v147 = vadd.f32 %v48, %v128
    %v148 = vadd.f32 %v49, %v132
    %vm149 = vcmask 254976
    %150 = vst.msk [vmem:[#allocation8] sm:$0x3] %vm149, %v141
    %151 = vst.msk [vmem:[#allocation8 + $0x2] sm:$0x3] %vm149, %v142
    %152 = vst.msk [vmem:[#allocation8 + $0x4] sm:$0x3] %vm149, %v143
    %153 = vst.msk [vmem:[#allocation8 + $0x6] sm:$0x3] %vm149, %v144
    %154 = vst.msk [vmem:[#allocation8 + $0x8] sm:$0x3] %vm149, %v145
    %155 = vst.msk [vmem:[#allocation8 + $0xa] sm:$0x3] %vm149, %v146
    %156 = vst.msk [vmem:[#allocation8 + $0xc] sm:$0x3] %vm149, %v147
    %157 = vst.msk [vmem:[#allocation8 + $0xe] sm:$0x3] %vm149, %v148
    // Predicated region
    $region22: #{tpu_custom_call.1} parent=1 // pred_check
      _
    $region23: #{tpu_custom_call.1} parent=1 // pred_check_branch
      %159 = sbr.rel (0) target = $region25
    $region24: #{tpu_custom_call.1} parent=1 // pred_region
      %s161 = ssub.s32 256, 256
      %162 = vsyncadd [#allocation5], %s161
      %s163 = sshll.u32 [#allocation8], 4
      %s164 = int_to_ptr.vmem [resolvable:$true] %s163
      %169 = dma.vmem_to_hbm [thread:$0]  %s164, 256, %s3, [#allocation5], 32, 32, 2
    $region25: #{tpu_custom_call.1} parent=1 // pred_fallthru
      _
    // Predicated region
    $region26: #{tpu_custom_call.1} parent=1 // pred_check
      _
    $region27: #{tpu_custom_call.1} parent=1 // pred_check_branch
      %171 = sbr.rel (0) target = $region29
    $region28: #{tpu_custom_call.1} parent=1 // pred_region
      %172 = dma.done [#allocation5], 256
    $region29: #{tpu_custom_call.1} parent=1 // pred_fallthru
      _
    %173 = vsyncpa [#allocation4], 1
    %174 = vsyncpa [#allocation7], 1
    %175 = vsyncpa [#allocation5], 1

</llo_original>
